<compile_context>
chip_gen: v5e
topology: v5e:2x2
jax: 0.10.0
libtpu: 0.0.40
codegen_flags: <defaults>
</compile_context>

<pallas_src>
import functools

import jax
import jax.numpy as jnp
from jax import lax
from jax.experimental import pallas as pl
from jax.experimental.pallas import tpu as pltpu


def _round_up(x, m):
    return ((x + m - 1) // m) * m


def _nll_kernel(x_ref, w_ref, t_ref, out_ref, m_sc, l_sc, t_sc,
                *, n_valid, vocab, tile_v):
    i = pl.program_id(0)            # row-tile index     ("parallel")
    j = pl.program_id(1)            # vocab-tile index   ("arbitrary", innermost)
    n_vtiles = pl.num_programs(1)

    @pl.when(j == 0)
    def _():
        m_sc[...] = jnp.full_like(m_sc, -1e30)
        l_sc[...] = jnp.zeros_like(l_sc)
        t_sc[...] = jnp.zeros_like(t_sc)

    x = x_ref[...]                  # (tile_n, D) native dtype (no upcast)
    w = w_ref[...]                  # (tile_v, D) native dtype

    # (tile_n, D) . (tile_v, D) -> (tile_n, tile_v); contract last dims of both
    # so the weight is consumed in its stored layout (no transpose on the XLU).
    logits = lax.dot_general(
        x, w, dimension_numbers=(((1,), (1,)), ((), ())),
        preferred_element_type=jnp.float32)

    # Mask padded vocab columns (static V).
    vocab_ids = j * tile_v + lax.broadcasted_iota(jnp.int32, logits.shape, 1)
    logits = jnp.where(vocab_ids < vocab, logits, jnp.float32(-1e30))

    # Online (flash-style) logsumexp across vocab tiles.
    m_new = jnp.maximum(m_sc[...], jnp.max(logits, axis=-1, keepdims=True))
    alpha = jnp.exp(m_sc[...] - m_new)
    p = jnp.exp(logits - m_new)
    l_sc[...] = alpha * l_sc[...] + jnp.sum(p, axis=-1, keepdims=True)
    m_sc[...] = m_new

    # Target logit: exactly one vocab tile contains target[i] for each row.
    tgt = t_ref[...]                # (tile_n, 1) int32
    t_sc[...] += jnp.sum(
        jnp.where(vocab_ids == tgt, logits, jnp.float32(0.0)),
        axis=-1, keepdims=True)

    @pl.when(j == n_vtiles - 1)
    def _():
        tile_n = out_ref.shape[0]
        row_ids = i * tile_n + lax.broadcasted_iota(jnp.int32, (tile_n, 1), 0)
        valid = (row_ids < n_valid) & (t_ref[...] >= 0)   # pad rows + ignore_index
        lse = m_sc[...] + jnp.log(l_sc[...])
        out_ref[...] = jnp.where(valid, lse - t_sc[...], jnp.float32(0.0))


def baseline_softmax_nll_loss(x, target, proj_weight, *, tile_n=256, tile_v=512):
    """x: (B, S, D) or (N, D); target: (B, S) or (N,); proj_weight: (V, D)."""
    # _reshape_inputs equivalent (plain-JAX glue).
    if x.ndim == 3:
        x = x.reshape(-1, x.shape[2])
    if target.ndim == 2:
        target = target.reshape(-1)

    N, D = x.shape
    V, D_w = proj_weight.shape
    assert D == D_w
    assert tile_n % 8 == 0 and tile_v % 128 == 0

    # Clamp tiles for small problems (keep sublane/lane alignment).
    tile_n = min(tile_n, _round_up(N, 8))
    tile_v = min(tile_v, _round_up(V, 128))

    n_pad = _round_up(N, tile_n)
    v_pad = _round_up(V, tile_v)

    if n_pad != N:
        x = jnp.pad(x, ((0, n_pad - N), (0, 0)))
        target = jnp.pad(target, (0, n_pad - N))
    if v_pad != V:
        proj_weight = jnp.pad(proj_weight, ((0, v_pad - V), (0, 0)))

    t2d = target.astype(jnp.int32).reshape(n_pad, 1)

    n_row_tiles = n_pad // tile_n
    n_vocab_tiles = v_pad // tile_v

    # Explicit VMEM budget (double-buffered inputs + f32 logits intermediates).
    vmem_est = (2 * tile_n * D * x.dtype.itemsize
                + 2 * tile_v * D * proj_weight.dtype.itemsize
                + 4 * tile_n * 4                     # targets + out blocks
                + 3 * tile_n * 4                     # scratch (m, l, t)
                + 2 * tile_n * tile_v * 4)           # logits / exp intermediates
    vmem_limit = int(max(2 * vmem_est, 16 * 1024 * 1024))

    kernel = functools.partial(_nll_kernel, n_valid=N, vocab=V, tile_v=tile_v)

    per_row = pl.pallas_call(
        kernel,
        out_shape=jax.ShapeDtypeStruct((n_pad, 1), jnp.float32),
        grid_spec=pltpu.PrefetchScalarGridSpec(
            num_scalar_prefetch=0,
            grid=(n_row_tiles, n_vocab_tiles),
            in_specs=[
                pl.BlockSpec((tile_n, D), lambda i, j: (i, 0)),   # x row tile
                pl.BlockSpec((tile_v, D), lambda i, j: (j, 0)),   # weight vocab tile
                pl.BlockSpec((tile_n, 1), lambda i, j: (i, 0)),   # target row tile
            ],
            out_specs=pl.BlockSpec((tile_n, 1), lambda i, j: (i, 0)),
            scratch_shapes=[pltpu.VMEM((tile_n, 1), jnp.float32),   # running max
                            pltpu.VMEM((tile_n, 1), jnp.float32),   # running sum exp
                            pltpu.VMEM((tile_n, 1), jnp.float32)],  # target logit
        ),
        compiler_params=pltpu.CompilerParams(
            dimension_semantics=("parallel", "arbitrary"),
            vmem_limit_bytes=vmem_limit),
    )(x, proj_weight, t2d)

    return jnp.sum(per_row)


def _reference(x, target, proj_weight):
    if x.ndim == 3:
        x = x.reshape(-1, x.shape[2])
    if target.ndim == 2:
        target = target.reshape(-1)
    logits = x.astype(jnp.float32) @ proj_weight.astype(jnp.float32).T
    logp = jax.nn.log_softmax(logits, axis=-1)
    return -jnp.sum(logp[jnp.arange(x.shape[0]), target])


if __name__ == "__main__":
    # Small shapes consistent with the module: batch=2, seq=8, hidden=32, vocab=64.
    B, S, D, V = 2, 8, 32, 64
    key = jax.random.PRNGKey(0)
    k_w, k_x, k_t = jax.random.split(key, 3)

    proj_weight = jax.random.normal(k_w, (V, D), dtype=jnp.float32) * 0.02
    x = jax.random.normal(k_x, (B, S, D), dtype=jnp.float32)
    target = jax.random.randint(k_t, (B, S), 0, V, dtype=jnp.int32)

    loss = baseline_softmax_nll_loss(x, target, proj_weight)
    loss = jax.block_until_ready(loss)

    ref = _reference(x, target, proj_weight)
    assert jnp.allclose(loss, ref, rtol=1e-5, atol=1e-3), (loss, ref)

    print("KERNEL_OK")
</pallas_src>

<mosaic_0001>
module attributes {stable_mosaic.version = 11 : i64} {
  func.func @_nll_kernel(%arg0: i32, %arg1: i32, %arg2: memref<16x32xf32, #tpu.memory_space<vmem>>, %arg3: memref<128x32xf32, #tpu.memory_space<vmem>>, %arg4: memref<16x1xi32, #tpu.memory_space<vmem>>, %arg5: memref<16x1xf32, #tpu.memory_space<vmem>>, %arg6: memref<16x1xf32, #tpu.memory_space<vmem>>, %arg7: memref<16x1xf32, #tpu.memory_space<vmem>>, %arg8: memref<16x1xf32, #tpu.memory_space<vmem>>) attributes {dimension_semantics = [#tpu.dimension_semantics<parallel>, #tpu.dimension_semantics<arbitrary>], iteration_bounds = array<i64: 1, 1>, scalar_prefetch = 0 : i64, scratch_operands = 3 : i64, tpu.core_type = #tpu.core_type<tc>, window_params = [{transform_indices = @transform_0, window_bounds = array<i64: 16, 32>}, {transform_indices = @transform_1, window_bounds = array<i64: 128, 32>}, {transform_indices = @transform_2, window_bounds = array<i64: 16, 1>}, {transform_indices = @transform_3, window_bounds = array<i64: 16, 1>}]} {
    %c0_i32 = arith.constant 0 : i32
    %0 = arith.cmpi eq, %arg1, %c0_i32 : i32
    %1 = arith.extui %0 : i1 to i32
    %c0_i32_0 = arith.constant 0 : i32
    %2 = arith.cmpi ne, %1, %c0_i32_0 : i32
    scf.if %2 {
      %cst_27 = arith.constant -1.000000e+30 : f32
      %44 = vector.broadcast %cst_27 : f32 to vector<16x1xf32>
      %c0_28 = arith.constant 0 : index
      %c0_29 = arith.constant 0 : index
      %45 = vector.load %arg6[%c0_28, %c0_29] : memref<16x1xf32, #tpu.memory_space<vmem>>, vector<16x1xf32>
      tpu.vector_store %arg6[%c0_28, %c0_29], %44 {strides = array<i32>} : memref<16x1xf32, #tpu.memory_space<vmem>>, vector<16x1xf32>,
      %cst_30 = arith.constant 0.000000e+00 : f32
      %46 = vector.broadcast %cst_30 : f32 to vector<16x1xf32>
      %c0_31 = arith.constant 0 : index
      %c0_32 = arith.constant 0 : index
      %47 = vector.load %arg7[%c0_31, %c0_32] : memref<16x1xf32, #tpu.memory_space<vmem>>, vector<16x1xf32>
      tpu.vector_store %arg7[%c0_31, %c0_32], %46 {strides = array<i32>} : memref<16x1xf32, #tpu.memory_space<vmem>>, vector<16x1xf32>,
      %cst_33 = arith.constant 0.000000e+00 : f32
      %48 = vector.broadcast %cst_33 : f32 to vector<16x1xf32>
      %c0_34 = arith.constant 0 : index
      %c0_35 = arith.constant 0 : index
      %49 = vector.load %arg8[%c0_34, %c0_35] : memref<16x1xf32, #tpu.memory_space<vmem>>, vector<16x1xf32>
      tpu.vector_store %arg8[%c0_34, %c0_35], %48 {strides = array<i32>} : memref<16x1xf32, #tpu.memory_space<vmem>>, vector<16x1xf32>,
    } else {
    }
    %c0 = arith.constant 0 : index
    %c0_1 = arith.constant 0 : index
    %3 = vector.load %arg2[%c0, %c0_1] : memref<16x32xf32, #tpu.memory_space<vmem>>, vector<16x32xf32>
    %c0_2 = arith.constant 0 : index
    %c0_3 = arith.constant 0 : index
    %4 = vector.load %arg3[%c0_2, %c0_3] : memref<128x32xf32, #tpu.memory_space<vmem>>, vector<128x32xf32>
    %cst = arith.constant dense<0.000000e+00> : vector<16x128xf32>
    %5 = tpu.matmul %3, %4, %cst {dimension_numbers = #tpu.dot_dimension_numbers<[1], [1], [0], [0], [0, 0, 1, 0], [], []>} : vector<16x32xf32>, vector<128x32xf32>, vector<16x128xf32> -> vector<16x128xf32>
    %c128_i32 = arith.constant 128 : i32
    %6 = arith.muli %arg1, %c128_i32 : i32
    %7 = tpu.iota {dimensions = array<i32: 1>} : vector<16x128xi32>
    %8 = vector.broadcast %6 : i32 to vector<16x128xi32>
    %9 = arith.addi %8, %7 : vector<16x128xi32>
    %c64_i32 = arith.constant 64 : i32
    %10 = vector.broadcast %c64_i32 : i32 to vector<16x128xi32>
    %11 = arith.cmpi slt, %9, %10 : vector<16x128xi32>
    %cst_4 = arith.constant -1.000000e+30 : f32
    %12 = vector.broadcast %cst_4 : f32 to vector<16x128xf32>
    %13 = arith.select %11, %5, %12 : vector<16x128xi1>, vector<16x128xf32>
    %c0_5 = arith.constant 0 : index
    %c0_6 = arith.constant 0 : index
    %14 = vector.load %arg6[%c0_5, %c0_6] : memref<16x1xf32, #tpu.memory_space<vmem>>, vector<16x1xf32>
    %cst_7 = arith.constant dense<0xFF800000> : vector<16xf32>
    %15 = vector.multi_reduction <maximumf>, %13, %cst_7 [1] : vector<16x128xf32> to vector<16xf32>
    %16 = vector.shape_cast %15 : vector<16xf32> to vector<16x1xf32>
    %17 = arith.maximumf %14, %16 : vector<16x1xf32>
    %c0_8 = arith.constant 0 : index
    %c0_9 = arith.constant 0 : index
    %18 = vector.load %arg6[%c0_8, %c0_9] : memref<16x1xf32, #tpu.memory_space<vmem>>, vector<16x1xf32>
    %19 = arith.subf %18, %17 : vector<16x1xf32>
    %20 = math.exp %19 : vector<16x1xf32>
    %21 = vector.broadcast %17 : vector<16x1xf32> to vector<16x128xf32>
    %22 = arith.subf %13, %21 : vector<16x128xf32>
    %23 = math.exp %22 : vector<16x128xf32>
    %c0_10 = arith.constant 0 : index
    %c0_11 = arith.constant 0 : index
    %24 = vector.load %arg7[%c0_10, %c0_11] : memref<16x1xf32, #tpu.memory_space<vmem>>, vector<16x1xf32>
    %25 = arith.mulf %20, %24 : vector<16x1xf32>
    %cst_12 = arith.constant dense<0.000000e+00> : vector<16xf32>
    %26 = vector.multi_reduction <add>, %23, %cst_12 [1] : vector<16x128xf32> to vector<16xf32>
    %27 = vector.shape_cast %26 : vector<16xf32> to vector<16x1xf32>
    %28 = arith.addf %25, %27 : vector<16x1xf32>
    %c0_13 = arith.constant 0 : index
    %c0_14 = arith.constant 0 : index
    %29 = vector.load %arg7[%c0_13, %c0_14] : memref<16x1xf32, #tpu.memory_space<vmem>>, vector<16x1xf32>
    tpu.vector_store %arg7[%c0_13, %c0_14], %28 {strides = array<i32>} : memref<16x1xf32, #tpu.memory_space<vmem>>, vector<16x1xf32>,
    %c0_15 = arith.constant 0 : index
    %c0_16 = arith.constant 0 : index
    %30 = vector.load %arg6[%c0_15, %c0_16] : memref<16x1xf32, #tpu.memory_space<vmem>>, vector<16x1xf32>
    tpu.vector_store %arg6[%c0_15, %c0_16], %17 {strides = array<i32>} : memref<16x1xf32, #tpu.memory_space<vmem>>, vector<16x1xf32>,
    %c0_17 = arith.constant 0 : index
    %c0_18 = arith.constant 0 : index
    %31 = vector.load %arg4[%c0_17, %c0_18] : memref<16x1xi32, #tpu.memory_space<vmem>>, vector<16x1xi32>
    %c0_19 = arith.constant 0 : index
    %c0_20 = arith.constant 0 : index
    %32 = vector.load %arg8[%c0_19, %c0_20] : memref<16x1xf32, #tpu.memory_space<vmem>>, vector<16x1xf32>
    %33 = vector.broadcast %31 : vector<16x1xi32> to vector<16x128xi32>
    %34 = arith.cmpi eq, %9, %33 : vector<16x128xi32>
    %cst_21 = arith.constant 0.000000e+00 : f32
    %35 = vector.broadcast %cst_21 : f32 to vector<16x128xf32>
    %36 = arith.select %34, %13, %35 : vector<16x128xi1>, vector<16x128xf32>
    %cst_22 = arith.constant dense<0.000000e+00> : vector<16xf32>
    %37 = vector.multi_reduction <add>, %36, %cst_22 [1] : vector<16x128xf32> to vector<16xf32>
    %38 = vector.shape_cast %37 : vector<16xf32> to vector<16x1xf32>
    %39 = arith.addf %32, %38 : vector<16x1xf32>
    %c0_23 = arith.constant 0 : index
    %c0_24 = arith.constant 0 : index
    %40 = vector.load %arg8[%c0_23, %c0_24] : memref<16x1xf32, #tpu.memory_space<vmem>>, vector<16x1xf32>
    tpu.vector_store %arg8[%c0_23, %c0_24], %39 {strides = array<i32>} : memref<16x1xf32, #tpu.memory_space<vmem>>, vector<16x1xf32>,
    %c0_i32_25 = arith.constant 0 : i32
    %41 = arith.cmpi eq, %arg1, %c0_i32_25 : i32
    %42 = arith.extui %41 : i1 to i32
    %c0_i32_26 = arith.constant 0 : i32
    %43 = arith.cmpi ne, %42, %c0_i32_26 : i32
    scf.if %43 {
      %c16_i32 = arith.constant 16 : i32
      %44 = arith.muli %arg0, %c16_i32 : i32
      %45 = tpu.iota {dimensions = array<i32: 0>} : vector<16x1xi32>
      %46 = vector.broadcast %44 : i32 to vector<16x1xi32>
      %47 = arith.addi %46, %45 : vector<16x1xi32>
      %c16_i32_27 = arith.constant 16 : i32
      %48 = vector.broadcast %c16_i32_27 : i32 to vector<16x1xi32>
      %49 = arith.cmpi slt, %47, %48 : vector<16x1xi32>
      %c0_28 = arith.constant 0 : index
      %c0_29 = arith.constant 0 : index
      %50 = vector.load %arg4[%c0_28, %c0_29] : memref<16x1xi32, #tpu.memory_space<vmem>>, vector<16x1xi32>
      %c0_i32_30 = arith.constant 0 : i32
      %51 = vector.broadcast %c0_i32_30 : i32 to vector<16x1xi32>
      %52 = arith.cmpi sge, %50, %51 : vector<16x1xi32>
      %53 = arith.andi %49, %52 : vector<16x1xi1>
      %c0_31 = arith.constant 0 : index
      %c0_32 = arith.constant 0 : index
      %54 = vector.load %arg6[%c0_31, %c0_32] : memref<16x1xf32, #tpu.memory_space<vmem>>, vector<16x1xf32>
      %c0_33 = arith.constant 0 : index
      %c0_34 = arith.constant 0 : index
      %55 = vector.load %arg7[%c0_33, %c0_34] : memref<16x1xf32, #tpu.memory_space<vmem>>, vector<16x1xf32>
      %56 = math.log %55 : vector<16x1xf32>
      %57 = arith.addf %54, %56 : vector<16x1xf32>
      %c0_35 = arith.constant 0 : index
      %c0_36 = arith.constant 0 : index
      %58 = vector.load %arg8[%c0_35, %c0_36] : memref<16x1xf32, #tpu.memory_space<vmem>>, vector<16x1xf32>
      %59 = arith.subf %57, %58 : vector<16x1xf32>
      %cst_37 = arith.constant 0.000000e+00 : f32
      %60 = vector.broadcast %cst_37 : f32 to vector<16x1xf32>
      %61 = arith.select %53, %59, %60 : vector<16x1xi1>, vector<16x1xf32>
      %c0_38 = arith.constant 0 : index
      %c0_39 = arith.constant 0 : index
      %62 = vector.load %arg5[%c0_38, %c0_39] : memref<16x1xf32, #tpu.memory_space<vmem>>, vector<16x1xf32>
      tpu.vector_store %arg5[%c0_38, %c0_39], %61 {strides = array<i32>} : memref<16x1xf32, #tpu.memory_space<vmem>>, vector<16x1xf32>,
    } else {
    }
    return
  }
  func.func @transform_0(%arg0: i32, %arg1: i32) -> (i32, i32) {
    %c0_i32 = arith.constant 0 : i32
    %c0_i32_0 = arith.constant 0 : i32
    return %arg0, %c0_i32 : i32, i32
  }
  func.func @transform_1(%arg0: i32, %arg1: i32) -> (i32, i32) {
    %c0_i32 = arith.constant 0 : i32
    %c0_i32_0 = arith.constant 0 : i32
    return %arg1, %c0_i32 : i32, i32
  }
  func.func @transform_2(%arg0: i32, %arg1: i32) -> (i32, i32) {
    %c0_i32 = arith.constant 0 : i32
    %c0_i32_0 = arith.constant 0 : i32
    return %arg0, %c0_i32 : i32, i32
  }
  func.func @transform_3(%arg0: i32, %arg1: i32) -> (i32, i32) {
    %c0_i32 = arith.constant 0 : i32
    %c0_i32_0 = arith.constant 0 : i32
    return %arg0, %c0_i32 : i32, i32
  }
}

</mosaic_0001>

<llo_original>
// kernel: tpu_custom_call.1
$region0: #{tpu_custom_call.1}
  #allocation0 [shape = 'u32[]', space=smem, size = 0x4, offset = 0x4, fixed_abs, tag = 'smem constant byte address 0x4 - core index']
  #allocation1 [shape = 'u32[72,128]{1,0:T(1,128)}', space=vmem, size = 0x9000, scoped, tag = 'internal scratch']
  #allocation2 [shape = 'f32[16,1]{1,0:T(8,128)}', space=vmem, size = 0x2000, scoped, tag = 'scratch operand']
  #allocation3 [shape = 'f32[16,1]{1,0:T(8,128)}', space=vmem, size = 0x2000, scoped, tag = 'scratch operand']
  #allocation4 [shape = 'f32[16,1]{1,0:T(8,128)}', space=vmem, size = 0x2000, scoped, tag = 'scratch operand']
  %s0 = inlined_call_operand.vmem [shape: f32[16,32], index: 0, kind: input, shape index: {}]
  %s1 = inlined_call_operand.vmem [shape: f32[128,32], index: 1, kind: input, shape index: {}]
  %s2 = inlined_call_operand.vmem [shape: s32[16,1], index: 2, kind: input, shape index: {}]
  %s3 = inlined_call_operand.vmem [shape: f32[16,1], index: 3, kind: output, shape index: {}]
  %s4 = sld [smem:[#allocation0]]
  $region30: #{tpu_custom_call.1} parent=0
    _
  %s6 = ssub.s32 1, %s4
  %s7 = scalar_select 0, %s6, %s4
  // Predicated region
  $region2: #{tpu_custom_call.1} parent=0 // pred_check
    _
  $region3: #{tpu_custom_call.1} parent=0 // pred_check_branch
    %9 = sbr.rel (0) target = $region5
  $region4: #{tpu_custom_call.1} parent=0 // pred_region
    _
  $region5: #{tpu_custom_call.1} parent=0 // pred_fallthru
    _
  // Predicated region
  $region6: #{tpu_custom_call.1} parent=0 // pred_check
    _
  $region7: #{tpu_custom_call.1} parent=0 // pred_check_branch
    %11 = sbr.rel (0) target = $region9
  $region8: #{tpu_custom_call.1} parent=0 // pred_region
    _
  $region9: #{tpu_custom_call.1} parent=0 // pred_fallthru
    _
  // Predicated region
  $region10: #{tpu_custom_call.1} parent=0 // pred_check
    _
  $region11: #{tpu_custom_call.1} parent=0 // pred_check_branch
    %13 = sbr.rel (0) target = $region13
  $region12: #{tpu_custom_call.1} parent=0 // pred_region
    _
  $region13: #{tpu_custom_call.1} parent=0 // pred_fallthru
    _
  %p14 = scmp.eq.s32.totalorder 0, 0
  // Predicated region
  $region14: #{tpu_custom_call.1} parent=0 // pred_check
    %p15 = pneg %p14
  $region15: #{tpu_custom_call.1} parent=0 // pred_check_branch
    %17 = sbr.rel (%p15) target = $region17
  $region16: #{tpu_custom_call.1} parent=0 // pred_region
    %vm18 = vcmask 7168
    %19 = vst.msk [vmem:[#allocation2] sm:$0xff] %vm18, -1e+30
    %20 = vst.msk [vmem:[#allocation2 + $0x8] sm:$0xff] %vm18, -1e+30
    %21 = vst.msk [vmem:[#allocation3] sm:$0xff] %vm18, 0.0
    %22 = vst.msk [vmem:[#allocation3 + $0x8] sm:$0xff] %vm18, 0.0
    %23 = vst.msk [vmem:[#allocation4] sm:$0xff] %vm18, 0.0
    %24 = vst.msk [vmem:[#allocation4 + $0x8] sm:$0xff] %vm18, 0.0
  $region17: #{tpu_custom_call.1} parent=0 // pred_fallthru
    _
  %v25 = vld [vmem:[%s0] sm:$0xff]
  %v26 = vld [vmem:[%s0 + $0x8] sm:$0xff]
  %v27 = vld [vmem:[%s1] sm:$0xff]
  %v28 = vld [vmem:[%s1 + $0x8] sm:$0xff]
  %v29 = vld [vmem:[%s1 + $0x10] sm:$0xff]
  %v30 = vld [vmem:[%s1 + $0x18] sm:$0xff]
  %v31 = vld [vmem:[%s1 + $0x20] sm:$0xff]
  %v32 = vld [vmem:[%s1 + $0x28] sm:$0xff]
  %v33 = vld [vmem:[%s1 + $0x30] sm:$0xff]
  %v34 = vld [vmem:[%s1 + $0x38] sm:$0xff]
  %v35 = vld [vmem:[%s1 + $0x40] sm:$0xff]
  %v36 = vld [vmem:[%s1 + $0x48] sm:$0xff]
  %v37 = vld [vmem:[%s1 + $0x50] sm:$0xff]
  %v38 = vld [vmem:[%s1 + $0x58] sm:$0xff]
  %v39 = vld [vmem:[%s1 + $0x60] sm:$0xff]
  %v40 = vld [vmem:[%s1 + $0x68] sm:$0xff]
  %v41 = vld [vmem:[%s1 + $0x70] sm:$0xff]
  %v42 = vld [vmem:[%s1 + $0x78] sm:$0xff]
  %vm43 = vcmask 261120
  %v45 = vsel %vm43, %v25, 0
  %v48 = vsel %vm43, %v26, 0
  %v51 = vsel %vm43, %v27, 0
  %v54 = vsel %vm43, %v28, 0
  %v57 = vsel %vm43, %v29, 0
  %v60 = vsel %vm43, %v30, 0
  %v63 = vsel %vm43, %v31, 0
  %v66 = vsel %vm43, %v32, 0
  %v69 = vsel %vm43, %v33, 0
  %v72 = vsel %vm43, %v34, 0
  %v75 = vsel %vm43, %v35, 0
  %v78 = vsel %vm43, %v36, 0
  %v81 = vsel %vm43, %v37, 0
  %v84 = vsel %vm43, %v38, 0
  %v87 = vsel %vm43, %v39, 0
  %v90 = vsel %vm43, %v40, 0
  %v93 = vsel %vm43, %v41, 0
  %v96 = vsel %vm43, %v42, 0
  %98 = vmatpush.xpose.msra.mxu0 %v96
  %99 = vmatpush.xpose.msra.mxu0 %v93
  %100 = vmatpush.xpose.msra.mxu0 %v90
  %101 = vmatpush.xpose.msra.mxu0 %v87
  %102 = vmatpush.xpose.msra.mxu0 %v84
  %103 = vmatpush.xpose.msra.mxu0 %v81
  %104 = vmatpush.xpose.msra.mxu0 %v78
  %105 = vmatpush.xpose.msra.mxu0 %v75
  %106 = vmatpush.xpose.msra.mxu0 %v72
  %107 = vmatpush.xpose.msra.mxu0 %v69
  %108 = vmatpush.xpose.msra.mxu0 %v66
  %109 = vmatpush.xpose.msra.mxu0 %v63
  %110 = vmatpush.xpose.msra.mxu0 %v60
  %111 = vmatpush.xpose.msra.mxu0 %v57
  %112 = vmatpush.xpose.msra.mxu0 %v54
  %113 = vmatpush.xpose.msra.mxu0 %v51
  %114 = vmatmul.f32.gmra.mxu0 %v45
  %v115 = vpop.f32.mrf.mxu0
  %v116 = vadd.f32 0.0, %v115
  %117 = vmatmul.f32.gmra.mxu0 %v48
  %v118 = vpop.f32.mrf.mxu0
  %v119 = vadd.f32 0.0, %v118
  %120 = vdwg.mxu0
  %s121 = smul.u32 0, 128
  %v122 = vlaneseq
  %v123 = vand.u32 %v122, 127
  %v124 = vstv %s121
  %v125 = vadd.s32 %v124, %v123
  %vm126 = vcmp.lt.s32.totalorder %v125, 64
  %v127 = vsel %vm126, %v116, -1e+30
  %v128 = vsel %vm126, %v119, -1e+30
  %v129 = vld [vmem:[#allocation2] sm:$0xff]
  %v130 = vld [vmem:[#allocation2 + $0x8] sm:$0xff]
  %131 = vmax.xlane.f32.xlu0 %v127
  %v132 = vpop.xlane.xlu0 %131
  %133 = vmax.xlane.f32.xlu0 %v128
  %v134 = vpop.xlane.xlu0 %133
  %v135 = vmax.f32 %v129, %v132
  %v136 = vmax.f32 %v130, %v134
  %v137 = vsub.f32 %v129, %v135
  %v138 = vsub.f32 %v130, %v136
  %v139 = vmul.f32 %v137, 1.442695
  %v140 = vpow.pop %v139
  %v141 = vmul.f32 %v138, 1.442695
  %v142 = vpow.pop %v141
  %144 = vset.pattern.permute.xlu0 0
  %145 = vperm.xlu0 %144, %v135
  %v146 = vpop.permute.xlu0 %145
  %149 = vset.pattern.permute.xlu0 0
  %150 = vperm.xlu0 %149, %v136
  %v151 = vpop.permute.xlu0 %150
  %v153 = vsub.f32 %v127, %v146
  %v154 = vsub.f32 %v128, %v151
  %v155 = vmul.f32 %v153, 1.442695
  %v156 = vpow.pop %v155
  %v157 = vmul.f32 %v154, 1.442695
  %v158 = vpow.pop %v157
  %v159 = vld [vmem:[#allocation3] sm:$0xff]
  %v160 = vld [vmem:[#allocation3 + $0x8] sm:$0xff]
  %v161 = vmul.f32 %v140, %v159
  %v162 = vmul.f32 %v142, %v160
  %163 = vadd.xlane.f32.xlu0 %v156
  %v164 = vpop.xlane.xlu0 %163
  %165 = vadd.xlane.f32.xlu0 %v158
  %v166 = vpop.xlane.xlu0 %165
  %v167 = vadd.f32 %v161, %v164
  %v168 = vadd.f32 %v162, %v166
  %vm169 = vcmask 7168
  %170 = vst.msk [vmem:[#allocation3] sm:$0xff] %vm169, %v167
  %171 = vst.msk [vmem:[#allocation3 + $0x8] sm:$0xff] %vm169, %v168
  %172 = vst.msk [vmem:[#allocation2] sm:$0xff] %vm169, %v135
  %173 = vst.msk [vmem:[#allocation2 + $0x8] sm:$0xff] %vm169, %v136
  %v174 = vld [vmem:[%s2] sm:$0xff]
  %v175 = vld [vmem:[%s2 + $0x8] sm:$0xff]
  %v176 = vld [vmem:[#allocation4] sm:$0xff]
  %v177 = vld [vmem:[#allocation4 + $0x8] sm:$0xff]
  %178 = vset.pattern.permute.xlu0 0
  %179 = vperm.xlu0 %178, %v174
  %v180 = vpop.permute.xlu0 %179
  %181 = vset.pattern.permute.xlu0 0
  %182 = vperm.xlu0 %181, %v175
  %v183 = vpop.permute.xlu0 %182
  %vm184 = vcmp.eq.s32.totalorder %v125, %v180
  %vm185 = vcmp.eq.s32.totalorder %v125, %v183
  %v186 = vsel %vm184, %v127, 0.0
  %v187 = vsel %vm185, %v128, 0.0
  %188 = vadd.xlane.f32.xlu0 %v186
  %v189 = vpop.xlane.xlu0 %188
  %190 = vadd.xlane.f32.xlu0 %v187
  %v191 = vpop.xlane.xlu0 %190
  %v192 = vadd.f32 %v176, %v189
  %v193 = vadd.f32 %v177, %v191
  %194 = vst.msk [vmem:[#allocation4] sm:$0xff] %vm169, %v192
  %195 = vst.msk [vmem:[#allocation4 + $0x8] sm:$0xff] %vm169, %v193
  // Predicated region
  $region18: #{tpu_custom_call.1} parent=0 // pred_check
    %p196 = pneg %p14
  $region19: #{tpu_custom_call.1} parent=0 // pred_check_branch
    %198 = sbr.rel (%p196) target = $region21
  $region20: #{tpu_custom_call.1} parent=0 // pred_region
    %s199 = smul.u32 0, 16
    %v200 = vlaneseq
    %v201 = vshrl.u32 %v200, 7
    %v202 = vadd.s32 %v201, 8
    %v203 = vstv %s199
    %v204 = vadd.s32 %v203, %v201
    %v205 = vadd.s32 %v203, %v202
    %vm206 = vcmp.lt.s32.totalorder %v204, 16
    %vm207 = vcmp.lt.s32.totalorder %v205, 16
    %v208 = vld [vmem:[%s2] sm:$0xff]
    %v209 = vld [vmem:[%s2 + $0x8] sm:$0xff]
    %vm210 = vcmp.ge.s32.totalorder %v208, 0
    %vm211 = vcmp.ge.s32.totalorder %v209, 0
    %vm212 = vmand %vm206, %vm210
    %vm213 = vmand %vm207, %vm211
    %v214 = vld [vmem:[#allocation2] sm:$0xff]
    %v215 = vld [vmem:[#allocation2 + $0x8] sm:$0xff]
    %v216 = vld [vmem:[#allocation3] sm:$0xff]
    %v217 = vld [vmem:[#allocation3 + $0x8] sm:$0xff]
    %v218 = vlog2.pop %v216
    %v219 = vmul.f32 %v218, 0.6931472
    %v220 = vlog2.pop %v217
    %v221 = vmul.f32 %v220, 0.6931472
    %v222 = vadd.f32 %v214, %v219
    %v223 = vadd.f32 %v215, %v221
    %v224 = vld [vmem:[#allocation4] sm:$0xff]
    %v225 = vld [vmem:[#allocation4 + $0x8] sm:$0xff]
    %v226 = vsub.f32 %v222, %v224
    %v227 = vsub.f32 %v223, %v225
    %v228 = vsel %vm212, %v226, 0.0
    %v229 = vsel %vm213, %v227, 0.0
    %230 = vst.msk [vmem:[%s3] sm:$0xff] %vm169, %v228
    %231 = vst.msk [vmem:[%s3 + $0x8] sm:$0xff] %vm169, %v229
  $region21: #{tpu_custom_call.1} parent=0 // pred_fallthru
    _
  // Predicated region
  $region22: #{tpu_custom_call.1} parent=0 // pred_check
    _
  $region23: #{tpu_custom_call.1} parent=0 // pred_check_branch
    %233 = sbr.rel (0) target = $region25
  $region24: #{tpu_custom_call.1} parent=0 // pred_region
    _
  $region25: #{tpu_custom_call.1} parent=0 // pred_fallthru
    _
  // Predicated region
  $region26: #{tpu_custom_call.1} parent=0 // pred_check
    _
  $region27: #{tpu_custom_call.1} parent=0 // pred_check_branch
    %235 = sbr.rel (0) target = $region29
  $region28: #{tpu_custom_call.1} parent=0 // pred_region
    _
  $region29: #{tpu_custom_call.1} parent=0 // pred_fallthru
    _

</llo_original>
